<compile_context>
chip_gen: v7x
topology: tpu7x:2x2x1
jax: 0.10.0
libtpu: 0.0.40
codegen_flags: <defaults>
</compile_context>

<pallas_src>
import jax
import jax.numpy as jnp
from jax.experimental import pallas as pl
from jax.experimental.pallas import tpu as pltpu


def _round_up(x: int, m: int) -> int:
    return (x + m - 1) // m * m


def _neighbour_channels_kernel(x_ref, o_ref):
    # x_ref, o_ref: (C, T) VMEM tiles (batch dim squeezed away).
    # total: (1, T) f32 sublane reduce (XLU); subtract on the VPU; lane-dense store.
    total = jnp.sum(x_ref[...], axis=0, keepdims=True, dtype=jnp.float32)
    o_ref[...] = (total - x_ref[...].astype(jnp.float32)).astype(o_ref.dtype)


def neighbour_channels(x_nchw: jax.Array, *, max_lane_tile: int | None = None) -> jax.Array:
    """Equivalent of NeighbourChannels(channels=C).forward(x) for NCHW input."""
    N, C, H, W = x_nchw.shape
    HW = H * W
    x = x_nchw.reshape(N, C, HW)

    itemsize = jnp.dtype(x.dtype).itemsize
    # Sublane packing: 8 rows/vreg for 32-bit, 16 for 16-bit, 32 for 8-bit dtypes.
    sublane = 8 * max(1, 4 // itemsize)
    padded_c = _round_up(C, sublane)
    bytes_per_lane = padded_c * itemsize  # actual VMEM footprint per lane column

    # ---- per-generation tile / VMEM budget --------------------------------
    try:
        vmem_cap = getattr(pltpu.get_tpu_info(), "vmem_capacity_bytes",
                           64 * 1024 * 1024)
    except Exception:
        vmem_cap = 64 * 1024 * 1024  # conservative (v7x)

    if vmem_cap <= 64 * 1024 * 1024:
        # v7x: 64 MiB VMEM.  4 MiB input tile -> in+out double buffers (~16 MiB)
        # plus f32 temps stay well under the 48 MiB limit.
        tile_budget = 4 * 1024 * 1024
        vmem_limit = 48 * 1024 * 1024
    else:
        # v5e / v6e: 128 MiB VMEM -> larger tiles amortise per-step overhead.
        tile_budget = 8 * 1024 * 1024
        vmem_limit = 100 * 1024 * 1024

    # Lane tile T: multiple of 128, sized by the byte budget, capped by HW.
    t_target = max(128, (tile_budget // bytes_per_lane) // 128 * 128)
    if max_lane_tile is not None:
        t_target = min(t_target, max(128, (max_lane_tile // 128) * 128))
    T = min(t_target, _round_up(HW, 128))

    hw_tiles = pl.cdiv(HW, T)
    grid = (hw_tiles, N)  # long (spatial) axis first -> good v7x megacore balance

    cost = pl.CostEstimate(
        flops=2 * N * C * HW,
        transcendentals=0,
        bytes_accessed=2 * N * C * HW * itemsize,
    )

    out = pl.pallas_call(
        _neighbour_channels_kernel,
        out_shape=jax.ShapeDtypeStruct((N, C, HW), x.dtype),
        grid_spec=pltpu.PrefetchScalarGridSpec(
            num_scalar_prefetch=0,
            grid=grid,
            in_specs=[
                pl.BlockSpec((pl.Squeezed(), C, T), lambda s, n: (n, 0, s)),
            ],
            out_specs=pl.BlockSpec((pl.Squeezed(), C, T), lambda s, n: (n, 0, s)),
        ),
        compiler_params=pltpu.CompilerParams(
            dimension_semantics=("parallel", "parallel"),
            vmem_limit_bytes=vmem_limit,
        ),
        cost_estimate=cost,
    )(x)

    return out.reshape(N, C, H, W)


def _reference(x_nchw: jax.Array) -> jax.Array:
    # Plain-JAX reference: explicit 1x1 conv with (ones - I) weights.
    N, C, H, W = x_nchw.shape
    w = jnp.ones((C, C), dtype=jnp.float32) - jnp.eye(C, dtype=jnp.float32)
    return jnp.einsum("oc,nchw->nohw", w, x_nchw.astype(jnp.float32)).astype(x_nchw.dtype)


if __name__ == "__main__":
    key = jax.random.PRNGKey(0)

    # Primary shape from the module spec.
    N, C, H, W = 2, 4, 16, 16
    key, k1 = jax.random.split(key)
    x = jax.random.normal(k1, (N, C, H, W), dtype=jnp.float32)
    y = jax.block_until_ready(neighbour_channels(x))
    y_ref = _reference(x)
    assert y.shape == (N, C, H, W)
    assert jnp.allclose(y, y_ref, atol=1e-5, rtol=1e-5)

    # Partial-last-block path (HW % T != 0, no wrapper padding), bf16 input.
    key, k2 = jax.random.split(key)
    x2 = jax.random.normal(k2, (1, 3, 16, 10), dtype=jnp.bfloat16)  # HW = 160
    y2 = jax.block_until_ready(neighbour_channels(x2, max_lane_tile=128))
    y2_ref = _reference(x2)
    assert y2.shape == x2.shape
    assert jnp.allclose(y2.astype(jnp.float32), y2_ref.astype(jnp.float32),
                        atol=2e-2, rtol=2e-2)

    print("KERNEL_OK")
</pallas_src>

<mosaic_0001>
module attributes {stable_mosaic.version = 11 : i64} {
  func.func @_neighbour_channels_kernel(%arg0: i32, %arg1: i32, %arg2: memref<1x4x256xf32, #tpu.memory_space<vmem>>, %arg3: memref<1x4x256xf32, #tpu.memory_space<vmem>>) attributes {dimension_semantics = [#tpu.dimension_semantics<parallel>, #tpu.dimension_semantics<parallel>], iteration_bounds = array<i64: 1, 2>, scalar_prefetch = 0 : i64, scratch_operands = 0 : i64, tpu.core_type = #tpu.core_type<tc>, window_params = [{transform_indices = @transform_0, window_bounds = array<i64: 1, 4, 256>}, {transform_indices = @transform_1, window_bounds = array<i64: 1, 4, 256>}]} {
    %c0 = arith.constant 0 : index
    %c0_0 = arith.constant 0 : index
    %c0_1 = arith.constant 0 : index
    %0 = vector.load %arg2[%c0, %c0_0, %c0_1] : memref<1x4x256xf32, #tpu.memory_space<vmem>>, vector<1x4x256xf32>
    %1 = vector.shape_cast %0 : vector<1x4x256xf32> to vector<4x256xf32>
    %cst = arith.constant dense<0.000000e+00> : vector<256xf32>
    %2 = vector.multi_reduction <add>, %1, %cst [0] : vector<4x256xf32> to vector<256xf32>
    %3 = vector.shape_cast %2 : vector<256xf32> to vector<1x256xf32>
    %c0_2 = arith.constant 0 : index
    %c0_3 = arith.constant 0 : index
    %c0_4 = arith.constant 0 : index
    %4 = vector.load %arg2[%c0_2, %c0_3, %c0_4] : memref<1x4x256xf32, #tpu.memory_space<vmem>>, vector<1x4x256xf32>
    %5 = vector.shape_cast %4 : vector<1x4x256xf32> to vector<4x256xf32>
    %6 = vector.broadcast %3 : vector<1x256xf32> to vector<4x256xf32>
    %7 = arith.subf %6, %5 : vector<4x256xf32>
    %c0_5 = arith.constant 0 : index
    %c0_6 = arith.constant 0 : index
    %c0_7 = arith.constant 0 : index
    %8 = vector.load %arg3[%c0_5, %c0_6, %c0_7] : memref<1x4x256xf32, #tpu.memory_space<vmem>>, vector<1x4x256xf32>
    %9 = vector.shape_cast %8 : vector<1x4x256xf32> to vector<4x256xf32>
    %10 = vector.shape_cast %7 : vector<4x256xf32> to vector<1x4x256xf32>
    tpu.vector_store %arg3[%c0_5, %c0_6, %c0_7], %10 {strides = array<i32>} : memref<1x4x256xf32, #tpu.memory_space<vmem>>, vector<1x4x256xf32>,
    return
  }
  func.func @transform_0(%arg0: i32, %arg1: i32) -> (i32, i32, i32) {
    %c0_i32 = arith.constant 0 : i32
    %c0_i32_0 = arith.constant 0 : i32
    return %arg1, %c0_i32, %arg0 : i32, i32, i32
  }
  func.func @transform_1(%arg0: i32, %arg1: i32) -> (i32, i32, i32) {
    %c0_i32 = arith.constant 0 : i32
    %c0_i32_0 = arith.constant 0 : i32
    return %arg1, %c0_i32, %arg0 : i32, i32, i32
  }
}

</mosaic_0001>

<llo_original>
// kernel: tpu_custom_call.1
$region0: #{tpu_custom_call.1}
  #allocation0 [shape = 'u32[]', space=smem, size = 0x4, offset = 0x4, fixed_abs, tag = 'smem constant byte address 0x4 - core index']
  #allocation1 [shape = 'u32[144,128]{1,0:T(1,128)}', space=vmem, size = 0x12000, scoped, tag = 'internal scratch']
  %s0 = inlined_call_operand.hbm [shape: f32[2,4,256], index: 0, kind: input, shape index: {}]
  %s1 = inlined_call_operand.hbm [shape: f32[2,4,256], index: 1, kind: output, shape index: {}]
  %s2 = sld [smem:[#allocation0]]
  $region41: #{tpu_custom_call.1} parent=0
    _
  %s4 = ssub.s32 1, %s2
  %s5 = scalar_select 0, %s4, %s2
  $region1: #{tpu_custom_call.1} parent=0
    #allocation2 [shape = 'u8[8192]{0}', space=vmem, size = 0x2000, scoped, tag = 'input window, operand 0']
    #allocation3 [shape = 's32[2]{0}', space=sflag, size = 0x8, scoped, tag = 'scoped memory for tpu_custom_call.1']
    #allocation4 [shape = 's32[2]{0}', space=sflag, size = 0x8, scoped, tag = 'scoped memory for tpu_custom_call.1']
    #allocation5 [shape = 'u8[8192]{0}', space=vmem, size = 0x2000, scoped, tag = 'output window, operand 0']
    %6 = vsyncpa [#allocation3], 0
    %s7 = scalar_lea.sflag [#allocation3], 1
    %8 = vsyncpa %s7, 0
    %9 = vsyncpa [#allocation4], 0
    %s10 = scalar_lea.sflag [#allocation4], 1
    %11 = vsyncpa %s10, 0
    loop: start=0, step=1, limit=4
    $region2: #{tpu_custom_call.1} parent=1 // loop_pre_header
      _
    $region3: #{tpu_custom_call.1} parent=1 // loop_header
      %s13 = sphi 0, %s17
      %p14 = scmp.ge.s32.totalorder %s13, 4
      %s20 = sphi 0, %s32
      %s21 = sphi 0, %s28
      %s22 = sphi 0, %s20
      %s23 = sphi 0, %s21
      %s24 = sphi 0, %s22
      %s25 = sphi 0, %s23
      %s37 = sphi 0, %s39
      %s40 = sphi 0, %s37
      %s41 = sphi 0, %s40
      %s57 = sphi 0, %s41
      %s65 = sphi 0, %s67
      %s68 = sphi 0, %s65
      %s69 = sphi 0, %s68
      %s85 = sphi 0, %s69
    $region4: #{tpu_custom_call.1} parent=1 // loop_header_branch
      %16 = sbr.rel (%p14) target = $region8
    $region5: #{tpu_custom_call.1} parent=1 // loop_body
      %s18 = ssub.s32 %s13, 1
      %s19 = ssub.s32 %s13, 2
      %s26 = sadd.s32 1, %s21
      %p27 = scmp.ge.s32.totalorder %s26, 2
      %s28 = scalar_select %p27, 0, %s26
      %s29 = sadd.s32 1, %s20
      %s30 = scalar_select %p27, %s29, %s20
      %p31 = scmp.ge.s32.totalorder %s30, 1
      %s32 = scalar_select %p31, 0, %s30
      %s33 = ssub.s32 %s21, %s28
      %s34 = ssub.s32 %s20, %s32
      %s35 = sor.u32 %s33, %s34
      %p36 = scmp.eq.s32.totalorder %s35, 0
      %s38 = sadd.s32 %s37, 1
      %s39 = scalar_select %p36, %s37, %s38
      %p42 = pneg %p36
      %p43 = scmp.eq.s32.totalorder %s13, 1
      %p44 = por %p42, %p43
      %p45 = scmp.ne.s32.totalorder %s37, %s40
      %p46 = scmp.eq.s32.totalorder %s13, 0
      %p47 = por %p45, %p46
      %p48 = scmp.ne.s32.totalorder %s37, %s40
      %p49 = scmp.eq.s32.totalorder %s18, 1
      %p50 = por %p48, %p49
      %p51 = scmp.ne.s32.totalorder %s40, %s41
      %p52 = scmp.eq.s32.totalorder %s18, 0
      %p53 = por %p51, %p52
      %p54 = scmp.ne.s32.totalorder %s40, %s41
      %p55 = scmp.eq.s32.totalorder %s19, 1
      %p56 = por %p54, %p55
      %p58 = scmp.ne.s32.totalorder %s41, %s57
      %p59 = scmp.eq.s32.totalorder %s19, 0
      %p60 = por %p58, %p59
      %s61 = ssub.s32 %s21, %s28
      %s62 = ssub.s32 %s20, %s32
      %s63 = sor.u32 %s61, %s62
      %p64 = scmp.eq.s32.totalorder %s63, 0
      %s66 = sadd.s32 %s65, 1
      %s67 = scalar_select %p64, %s65, %s66
      %p70 = pneg %p64
      %p71 = scmp.eq.s32.totalorder %s13, 1
      %p72 = por %p70, %p71
      %p73 = scmp.ne.s32.totalorder %s65, %s68
      %p74 = scmp.eq.s32.totalorder %s13, 0
      %p75 = por %p73, %p74
      %p76 = scmp.ne.s32.totalorder %s65, %s68
      %p77 = scmp.eq.s32.totalorder %s18, 1
      %p78 = por %p76, %p77
      %p79 = scmp.ne.s32.totalorder %s68, %s69
      %p80 = scmp.eq.s32.totalorder %s18, 0
      %p81 = por %p79, %p80
      %p82 = scmp.ne.s32.totalorder %s68, %s69
      %p83 = scmp.eq.s32.totalorder %s19, 1
      %p84 = por %p82, %p83
      %p86 = scmp.ne.s32.totalorder %s69, %s85
      %p87 = scmp.eq.s32.totalorder %s19, 0
      %p88 = por %p86, %p87
      %p89 = scmp.le.s32.totalorder 1, %s13
      %p90 = scmp.lt.s32.totalorder %s13, 3
      %p91 = pnand %p89, %p90
      %p92 = pneg %p91
      // Predicated region
      $region9: #{tpu_custom_call.1} parent=5 // pred_check
        _
      $region10: #{tpu_custom_call.1} parent=5 // pred_check_branch
        %94 = sbr.rel (%p91) target = $region12
      $region11: #{tpu_custom_call.1} parent=5 // pred_region
        %s95 = ssub.s32 %s13, 1
      $region12: #{tpu_custom_call.1} parent=5 // pred_fallthru
        _
      %p96 = scmp.lt.s32.totalorder %s13, 2
      // Predicated region
      $region13: #{tpu_custom_call.1} parent=5 // pred_check
        %p97 = pneg %p96
      $region14: #{tpu_custom_call.1} parent=5 // pred_check_branch
        %99 = sbr.rel (%p97) target = $region16
      $region15: #{tpu_custom_call.1} parent=5 // pred_region
        // Predicated region
        $region17: #{tpu_custom_call.1} parent=15 // pred_check
          %p100 = pneg %p47
        $region18: #{tpu_custom_call.1} parent=15 // pred_check_branch
          %102 = sbr.rel (%p100) target = $region20
        $region19: #{tpu_custom_call.1} parent=15 // pred_region
          %s103 = sand.u32 %s37, 1
          %s104 = scalar_lea.sflag [#allocation3], %s103
          %s105 = sand.u32 %s37, 1
          %s106 = smul.addr %s105, 8
          %s107 = scalar_lea.vmem [#allocation2], %s106
          %s108 = smul.u32 2, %s20
          %s110 = ssub.s32 128, 128
          %111 = vsyncadd %s104, %s110
          %s112 = smul.addr %s21, 2
          %s113 = sadd.s32 %s108, %s112
          %s114 = smul.addr %s113, 64
          %s115 = scalar_lea.hbm %s0, %s114
          %s117 = sshll.u32 %s107, 4
          %s118 = int_to_ptr.vmem [resolvable:$true] %s117
          %120 = dma.hbm_to_vmem [thread:$0]  %s115, 128, %s118, %s104
        $region20: #{tpu_custom_call.1} parent=15 // pred_fallthru
          _
      $region16: #{tpu_custom_call.1} parent=5 // pred_fallthru
        _
      %p121 = scmp.le.s32.totalorder 1, %s13
      %p122 = scmp.lt.s32.totalorder %s13, 3
      %p123 = pnand %p121, %p122
      %p124 = pneg %p123
      // Predicated region
      $region21: #{tpu_custom_call.1} parent=5 // pred_check
        _
      $region22: #{tpu_custom_call.1} parent=5 // pred_check_branch
        %126 = sbr.rel (%p123) target = $region24
      $region23: #{tpu_custom_call.1} parent=5 // pred_region
        %s127 = ssub.s32 %s13, 1
        %s128 = sand.u32 %s40, 1
        %s129 = scalar_lea.sflag [#allocation3], %s128
        %s130 = sand.u32 %s40, 1
        %s131 = smul.addr %s130, 8
        %s132 = scalar_lea.vmem [#allocation2], %s131
        // Predicated region
        $region25: #{tpu_custom_call.1} parent=23 // pred_check
          %p133 = pneg %p53
        $region26: #{tpu_custom_call.1} parent=23 // pred_check_branch
          %135 = sbr.rel (%p133) target = $region28
        $region27: #{tpu_custom_call.1} parent=23 // pred_region
          %136 = dma.done %s129, 128
        $region28: #{tpu_custom_call.1} parent=23 // pred_fallthru
          _
        %s137 = sand.u32 %s40, 1
        %s138 = scalar_lea.sflag [#allocation3], %s137
        %s139 = sand.u32 %s40, 1
        %s140 = smul.addr %s139, 8
        %s141 = scalar_lea.vmem [#allocation2], %s140
        %p142 = pneg %p53
        %p143 = pneg %p50
        %p144 = pneg %p81
        %p145 = pneg %p78
        %s146 = sand.u32 %s68, 1
        %s147 = scalar_lea.sflag [#allocation4], %s146
        %s148 = sand.u32 %s68, 1
        %s149 = smul.addr %s148, 8
        %s150 = scalar_lea.vmem [#allocation5], %s149
        %s151 = smul.u32 2, %s22
        %s152 = smul.u32 2, %s22
        %v153 = vld [vmem:[%s132] sm:$0xff]
        %v155 = vcombine.high %v153, %v153
        %vm157 = vcmask 1043456
        %v158 = vsel %vm157, %v153, 0.0
        %v159 = vrot.slane %v158, 4
        %v160 = vadd.f32 %v158, %v159
        %v161 = vrot.slane %v160, 2
        %v162 = vadd.f32 %v160, %v161
        %v163 = vrot.slane %v162, 1
        %v164 = vadd.f32 %v162, %v163
        %v165 = vsel %vm157, %v155, 0.0
        %v166 = vrot.slane %v165, 4
        %v167 = vadd.f32 %v165, %v166
        %v168 = vrot.slane %v167, 2
        %v169 = vadd.f32 %v167, %v168
        %v170 = vrot.slane %v169, 1
        %v171 = vadd.f32 %v169, %v170
        %v172 = vsub.f32 %v164, %v153
        %v173 = vsub.f32 %v171, %v155
        %v176 = vcombine.low %v172, %v173
        %178 = vst [vmem:[%s150] sm:$0xff] %v176
        %s179 = sand.u32 %s68, 1
        %s180 = scalar_lea.sflag [#allocation4], %s179
        %s181 = sand.u32 %s68, 1
        %s182 = smul.addr %s181, 8
        %s183 = scalar_lea.vmem [#allocation5], %s182
        // Predicated region
        $region29: #{tpu_custom_call.1} parent=23 // pred_check
          %p184 = pneg %p78
        $region30: #{tpu_custom_call.1} parent=23 // pred_check_branch
          %186 = sbr.rel (%p184) target = $region32
        $region31: #{tpu_custom_call.1} parent=23 // pred_region
          %s187 = smul.u32 2, %s22
          %s189 = ssub.s32 128, 128
          %190 = vsyncadd %s180, %s189
          %s191 = smul.addr %s23, 2
          %s192 = sadd.s32 %s187, %s191
          %s193 = smul.addr %s192, 64
          %s194 = scalar_lea.hbm %s1, %s193
          %s196 = sshll.u32 %s183, 4
          %s197 = int_to_ptr.vmem [resolvable:$true] %s196
          %199 = dma.vmem_to_hbm [thread:$0]  %s197, 128, %s194, %s180
        $region32: #{tpu_custom_call.1} parent=23 // pred_fallthru
          _
      $region24: #{tpu_custom_call.1} parent=5 // pred_fallthru
        _
      %p200 = scmp.le.s32.totalorder 2, %s13
      // Predicated region
      $region33: #{tpu_custom_call.1} parent=5 // pred_check
        %p201 = pneg %p200
      $region34: #{tpu_custom_call.1} parent=5 // pred_check_branch
        %203 = sbr.rel (%p201) target = $region36
      $region35: #{tpu_custom_call.1} parent=5 // pred_region
        %s204 = ssub.s32 %s13, 2
        // Predicated region
        $region37: #{tpu_custom_call.1} parent=35 // pred_check
          %p205 = pneg %p84
        $region38: #{tpu_custom_call.1} parent=35 // pred_check_branch
          %207 = sbr.rel (%p205) target = $region40
        $region39: #{tpu_custom_call.1} parent=35 // pred_region
          %s208 = sand.u32 %s69, 1
          %s209 = scalar_lea.sflag [#allocation4], %s208
          %s210 = sand.u32 %s69, 1
          %s211 = smul.addr %s210, 8
          %s212 = scalar_lea.vmem [#allocation5], %s211
          %213 = dma.done %s209, 128
        $region40: #{tpu_custom_call.1} parent=35 // pred_fallthru
          _
      $region36: #{tpu_custom_call.1} parent=5 // pred_fallthru
        _
    $region6: #{tpu_custom_call.1} parent=1 // loop_footer
      %s17 = sadd.s32 1, %s13
    $region7: #{tpu_custom_call.1} parent=1 // loop_footer_branch
      %12 = sbr.rel target = $region3
    $region8: #{tpu_custom_call.1} parent=1 // loop_exit
      _
    %214 = vsyncpa [#allocation3], 1
    %s215 = scalar_lea.sflag [#allocation3], 1
    %216 = vsyncpa %s215, 1
    %217 = vsyncpa [#allocation4], 1
    %s218 = scalar_lea.sflag [#allocation4], 1
    %219 = vsyncpa %s218, 1

</llo_original>
